<compile_context>
chip_gen: v7x
topology: tpu7x:2x2x1
jax: 0.10.0
libtpu: 0.0.40
codegen_flags: <defaults>
</compile_context>

<pallas_src>
import jax
import jax.numpy as jnp
from jax.experimental import pallas as pl
from jax.experimental.pallas import tpu as pltpu


def _round_up(x, m):
    return (x + m - 1) // m * m


# ----------------------------------------------------------------------------
# Kernel
# ----------------------------------------------------------------------------
def ffn_kernel(x_ref, w1_ref, b1_ref, w2_ref, b2_ref, o_ref, acc_ref):
    # x_ref  : (tm, dm_p)   bf16
    # w1_ref : (dm_p, tff)  bf16     b1_ref : (1, tff)   f32
    # w2_ref : (tff, dm_p)  bf16     b2_ref : (1, dm_p)  f32
    # o_ref  : (tm, dm_p)   out dtype
    # acc_ref: (tm, dm_p)   f32 accumulator, persists across the k axis
    k = pl.program_id(1)

    # (tm, dm_p) @ (dm_p, tff) on the MXU, f32 accumulation.
    h = jnp.dot(x_ref[...], w1_ref[...], preferred_element_type=jnp.float32)
    # Bias + ReLU in f32 (VPU); dropout (eval / inference mode) == identity.
    h = jnp.maximum(h + b1_ref[...], 0.0)
    # (tm, tff) @ (tff, dm_p), f32 result.
    contrib = jnp.dot(h.astype(w2_ref.dtype), w2_ref[...],
                      preferred_element_type=jnp.float32)

    @pl.when(k == 0)
    def _():
        acc_ref[...] = contrib          # first step: direct write (no RMW)

    @pl.when(k != 0)
    def _():
        acc_ref[...] += contrib         # later steps: accumulate

    @pl.when(k == pl.num_programs(1) - 1)
    def _():
        o_ref[...] = (acc_ref[...] + b2_ref[...]).astype(o_ref.dtype)


# ----------------------------------------------------------------------------
# Per-chip configuration
# ----------------------------------------------------------------------------
def _chip_params():
    """Returns (mxu_align, tm_pref, vmem_budget_bytes, two_tensorcores)."""
    kind = ""
    try:
        kind = jax.devices()[0].device_kind.lower()
    except Exception:
        pass
    try:
        vmem_cap = int(pltpu.get_tpu_info().vmem_capacity_bytes)
    except Exception:
        vmem_cap = 64 << 20          # conservative fallback (v7x-sized)

    two_tc = "v7" in kind
    if "v7" in kind:
        mxu_align, tm_pref = 256, 512        # 2x256^2 MXU, 64 MiB VMEM/TC
    elif "v6" in kind:
        mxu_align, tm_pref = 256, 1024       # worst compute:HBM ratio -> big tm
    elif "v5" in kind and ("lite" in kind or "5e" in kind):
        mxu_align, tm_pref = 128, 512        # 4x128^2 MXU
    else:
        # Unknown chip: infer from VMEM size, stay 128-aligned (always valid).
        mxu_align = 128
        tm_pref = 512 if vmem_cap <= (64 << 20) else 768

    # Leave headroom for Mosaic internal scratch / semaphores.
    budget = max(32 << 20, min(int(vmem_cap * 0.85), vmem_cap - (10 << 20)))
    return mxu_align, tm_pref, budget, two_tc


# ----------------------------------------------------------------------------
# Wrapper
# ----------------------------------------------------------------------------
def feed_forward_block(x, w1, b1, w2, b2, *, tm=None, tff=None):
    """x: [B, S, d_model] -> [B, S, d_model].

    Weights are stored as [in_features, out_features] (PyTorch stores
    [out, in]; pre-transpose when importing torch weights).
    """
    B, S, d_model = x.shape
    d_ff = w1.shape[1]
    M = B * S
    out_dtype = x.dtype
    out_isz = jnp.dtype(out_dtype).itemsize

    mxu_align, tm_pref, vmem_budget, two_tc = _chip_params()

    # MXU-friendly, lane-dense padding of the feature dims.
    dm_p = _round_up(d_model, mxu_align)
    dff_full = _round_up(d_ff, mxu_align)

    # ---- row tile --------------------------------------------------------
    if tm is None:
        tm = tm_pref
    # never below 128 (MXU fill/drain, sublane packing), never (much) more
    # than the padded row count needs.
    tm = max(128, min(tm, _round_up(M, 128)))
    # v7x megacore: give both TensorCores a row tile when M allows it.
    if two_tc and _round_up(M, tm) // tm < 2 and M > 128 and tm > 128:
        tm = max(128, _round_up((M + 1) // 2, 128))
    M_p = _round_up(M, tm)

    # ---- d_ff tile (prefer full weight residency) -------------------------
    def footprint(tm_, tff_):
        return (2 * tm_ * dm_p * 2              # x tiles, bf16, double-buffered
                + 2 * tm_ * dm_p * out_isz      # out tiles, double-buffered
                + tm_ * dm_p * 4                # f32 accumulator scratch
                + 2 * dm_p * tff_ * 2           # W1 tiles, bf16, double-buffered
                + 2 * tff_ * dm_p * 2           # W2 tiles, bf16, double-buffered
                + 2 * tff_ * 4                  # b1 tile (f32)
                + 2 * dm_p * 4)                 # b2 (f32)

    if tff is None:
        tff = dff_full
        # shrink the d_ff tile until the footprint fits the per-chip budget
        while footprint(tm, tff) > vmem_budget and tff > mxu_align:
            tff = max(mxu_align, _round_up(tff // 2, mxu_align))
        # pathological cases (huge d_model): shrink rows as a last resort
        while footprint(tm, tff) > vmem_budget and tm > 128:
            tm = max(128, tm // 2)
            M_p = _round_up(M, tm)
    else:
        tff = min(_round_up(tff, 128), dff_full)
    dff_p = _round_up(d_ff, tff)

    n_i = M_p // tm
    n_k = dff_p // tff

    # ---- pad operands (bf16 MXU operands, f32 biases) ---------------------
    x2d = jnp.pad(x.reshape(M, d_model).astype(jnp.bfloat16),
                  ((0, M_p - M), (0, dm_p - d_model)))
    w1_p = jnp.pad(w1.astype(jnp.bfloat16),
                   ((0, dm_p - d_model), (0, dff_p - d_ff)))
    w2_p = jnp.pad(w2.astype(jnp.bfloat16),
                   ((0, dff_p - d_ff), (0, dm_p - d_model)))
    b1_p = jnp.pad(b1.astype(jnp.float32), (0, dff_p - d_ff)).reshape(1, dff_p)
    b2_p = jnp.pad(b2.astype(jnp.float32), (0, dm_p - d_model)).reshape(1, dm_p)

    # ---- VMEM limit: derived from the chip, with headroom -----------------
    vmem_limit = int(min(vmem_budget,
                         max(32 << 20, footprint(tm, tff) + (8 << 20))))

    # ---- cost estimate (padded dims + actual weight re-reads) --------------
    weight_reads = 1 if n_k == 1 else n_i    # constant block index => 1 fetch
    cost = pl.CostEstimate(
        flops=4 * M_p * dm_p * dff_p,        # two matmuls
        transcendentals=0,
        bytes_accessed=int(M_p * dm_p * 2                       # x (bf16)
                           + M_p * dm_p * out_isz               # out
                           + weight_reads * (2 * dm_p * dff_p * 2)  # W1 + W2
                           + (dff_p + dm_p) * 4),               # biases
    )

    out2d = pl.pallas_call(
        ffn_kernel,
        out_shape=jax.ShapeDtypeStruct((M_p, dm_p), out_dtype),
        grid_spec=pltpu.PrefetchScalarGridSpec(
            num_scalar_prefetch=0,
            grid=(n_i, n_k),
            in_specs=[
                pl.BlockSpec((tm, dm_p), lambda i, k: (i, 0)),    # x rows
                pl.BlockSpec((dm_p, tff), lambda i, k: (0, k)),   # W1 tile
                pl.BlockSpec((1, tff), lambda i, k: (0, k)),      # b1 tile
                pl.BlockSpec((tff, dm_p), lambda i, k: (k, 0)),   # W2 tile
                pl.BlockSpec((1, dm_p), lambda i, k: (0, 0)),     # b2
            ],
            out_specs=pl.BlockSpec((tm, dm_p), lambda i, k: (i, 0)),
            scratch_shapes=[pltpu.VMEM((tm, dm_p), jnp.float32)],
        ),
        compiler_params=pltpu.CompilerParams(
            dimension_semantics=("parallel", "arbitrary"),
            vmem_limit_bytes=vmem_limit),
        cost_estimate=cost,
    )(x2d, w1_p, b1_p, w2_p, b2_p)

    return out2d[:M, :d_model].reshape(B, S, d_model)


# ----------------------------------------------------------------------------
# Params & test
# ----------------------------------------------------------------------------
def init_params(key, d_model, d_ff, dtype=jnp.float32):
    """Deterministic init mimicking PyTorch nn.Linear (uniform +-1/sqrt(fan_in))."""
    k1, k2, k3, k4 = jax.random.split(key, 4)
    bound1 = 1.0 / (d_model ** 0.5)
    bound2 = 1.0 / (d_ff ** 0.5)
    # stored as [in_features, out_features] (transpose of PyTorch's layout)
    w1 = jax.random.uniform(k1, (d_model, d_ff), dtype, -bound1, bound1)
    b1 = jax.random.uniform(k2, (d_ff,), dtype, -bound1, bound1)
    w2 = jax.random.uniform(k3, (d_ff, d_model), dtype, -bound2, bound2)
    b2 = jax.random.uniform(k4, (d_model,), dtype, -bound2, bound2)
    return w1, b1, w2, b2


if __name__ == "__main__":
    batch, seq, d_model, d_ff = 2, 8, 32, 64

    key = jax.random.PRNGKey(0)
    kx, kp = jax.random.split(key)
    x = jax.random.normal(kx, (batch, seq, d_model), jnp.float32)
    w1, b1, w2, b2 = init_params(kp, d_model, d_ff)

    out = feed_forward_block(x, w1, b1, w2, b2)
    out = jax.block_until_ready(out)

    # pure-JAX f32 reference; bf16 matmul operands => loose tolerance.
    ref = jnp.maximum(x @ w1 + b1, 0.0) @ w2 + b2
    assert out.shape == (batch, seq, d_model)
    assert jnp.allclose(out, ref, atol=5e-2, rtol=5e-2), \
        float(jnp.max(jnp.abs(out - ref)))

    print("KERNEL_OK")
</pallas_src>

<mosaic_0001>
module attributes {stable_mosaic.version = 11 : i64} {
  func.func @ffn_kernel(%arg0: i32, %arg1: i32, %arg2: memref<128x128xbf16, #tpu.memory_space<vmem>>, %arg3: memref<128x128xbf16, #tpu.memory_space<vmem>>, %arg4: memref<1x128xf32, #tpu.memory_space<vmem>>, %arg5: memref<128x128xbf16, #tpu.memory_space<vmem>>, %arg6: memref<1x128xf32, #tpu.memory_space<vmem>>, %arg7: memref<128x128xf32, #tpu.memory_space<vmem>>, %arg8: memref<128x128xf32, #tpu.memory_space<vmem>>) attributes {dimension_semantics = [#tpu.dimension_semantics<parallel>, #tpu.dimension_semantics<arbitrary>], iteration_bounds = array<i64: 1, 1>, scalar_prefetch = 0 : i64, scratch_operands = 1 : i64, tpu.core_type = #tpu.core_type<tc>, window_params = [{transform_indices = @transform_0, window_bounds = array<i64: 128, 128>}, {transform_indices = @transform_1, window_bounds = array<i64: 128, 128>}, {transform_indices = @transform_2, window_bounds = array<i64: 1, 128>}, {transform_indices = @transform_3, window_bounds = array<i64: 128, 128>}, {pipeline_mode = #tpu.pipeline_mode<synchronous>, transform_indices = @transform_4, window_bounds = array<i64: 1, 128>}, {transform_indices = @transform_5, window_bounds = array<i64: 128, 128>}]} {
    %c0 = arith.constant 0 : index
    %c0_0 = arith.constant 0 : index
    %0 = vector.load %arg2[%c0, %c0_0] : memref<128x128xbf16, #tpu.memory_space<vmem>>, vector<128x128xbf16>
    %c0_1 = arith.constant 0 : index
    %c0_2 = arith.constant 0 : index
    %1 = vector.load %arg3[%c0_1, %c0_2] : memref<128x128xbf16, #tpu.memory_space<vmem>>, vector<128x128xbf16>
    %cst = arith.constant dense<0.000000e+00> : vector<128x128xf32>
    %2 = tpu.matmul %0, %1, %cst {dimension_numbers = #tpu.dot_dimension_numbers<[1], [0], [0], [1], [0, 0, 1, 1], [], []>} : vector<128x128xbf16>, vector<128x128xbf16>, vector<128x128xf32> -> vector<128x128xf32>
    %c0_3 = arith.constant 0 : index
    %c0_4 = arith.constant 0 : index
    %3 = vector.load %arg4[%c0_3, %c0_4] : memref<1x128xf32, #tpu.memory_space<vmem>>, vector<1x128xf32>
    %4 = vector.broadcast %3 : vector<1x128xf32> to vector<128x128xf32>
    %5 = arith.addf %2, %4 : vector<128x128xf32>
    %cst_5 = arith.constant 0.000000e+00 : f32
    %6 = vector.broadcast %cst_5 : f32 to vector<128x128xf32>
    %7 = arith.maximumf %5, %6 : vector<128x128xf32>
    %8 = arith.truncf %7 : vector<128x128xf32> to vector<128x128xbf16>
    %c0_6 = arith.constant 0 : index
    %c0_7 = arith.constant 0 : index
    %9 = vector.load %arg5[%c0_6, %c0_7] : memref<128x128xbf16, #tpu.memory_space<vmem>>, vector<128x128xbf16>
    %cst_8 = arith.constant dense<0.000000e+00> : vector<128x128xf32>
    %10 = tpu.matmul %8, %9, %cst_8 {dimension_numbers = #tpu.dot_dimension_numbers<[1], [0], [0], [1], [0, 0, 1, 1], [], []>} : vector<128x128xbf16>, vector<128x128xbf16>, vector<128x128xf32> -> vector<128x128xf32>
    %c0_i32 = arith.constant 0 : i32
    %11 = arith.cmpi eq, %arg1, %c0_i32 : i32
    %12 = arith.extui %11 : i1 to i32
    %c0_i32_9 = arith.constant 0 : i32
    %13 = arith.cmpi ne, %12, %c0_i32_9 : i32
    scf.if %13 {
      %c0_14 = arith.constant 0 : index
      %c0_15 = arith.constant 0 : index
      %20 = vector.load %arg8[%c0_14, %c0_15] : memref<128x128xf32, #tpu.memory_space<vmem>>, vector<128x128xf32>
      tpu.vector_store %arg8[%c0_14, %c0_15], %10 {strides = array<i32>} : memref<128x128xf32, #tpu.memory_space<vmem>>, vector<128x128xf32>,
    } else {
    }
    %c0_i32_10 = arith.constant 0 : i32
    %14 = arith.cmpi ne, %arg1, %c0_i32_10 : i32
    %15 = arith.extui %14 : i1 to i32
    %c0_i32_11 = arith.constant 0 : i32
    %16 = arith.cmpi ne, %15, %c0_i32_11 : i32
    scf.if %16 {
      %c0_14 = arith.constant 0 : index
      %c0_15 = arith.constant 0 : index
      %20 = vector.load %arg8[%c0_14, %c0_15] : memref<128x128xf32, #tpu.memory_space<vmem>>, vector<128x128xf32>
      %21 = arith.addf %20, %10 : vector<128x128xf32>
      %c0_16 = arith.constant 0 : index
      %c0_17 = arith.constant 0 : index
      %22 = vector.load %arg8[%c0_16, %c0_17] : memref<128x128xf32, #tpu.memory_space<vmem>>, vector<128x128xf32>
      tpu.vector_store %arg8[%c0_16, %c0_17], %21 {strides = array<i32>} : memref<128x128xf32, #tpu.memory_space<vmem>>, vector<128x128xf32>,
    } else {
    }
    %c0_i32_12 = arith.constant 0 : i32
    %17 = arith.cmpi eq, %arg1, %c0_i32_12 : i32
    %18 = arith.extui %17 : i1 to i32
    %c0_i32_13 = arith.constant 0 : i32
    %19 = arith.cmpi ne, %18, %c0_i32_13 : i32
    scf.if %19 {
      %c0_14 = arith.constant 0 : index
      %c0_15 = arith.constant 0 : index
      %20 = vector.load %arg8[%c0_14, %c0_15] : memref<128x128xf32, #tpu.memory_space<vmem>>, vector<128x128xf32>
      %c0_16 = arith.constant 0 : index
      %c0_17 = arith.constant 0 : index
      %21 = vector.load %arg6[%c0_16, %c0_17] : memref<1x128xf32, #tpu.memory_space<vmem>>, vector<1x128xf32>
      %22 = vector.broadcast %21 : vector<1x128xf32> to vector<128x128xf32>
      %23 = arith.addf %20, %22 : vector<128x128xf32>
      %c0_18 = arith.constant 0 : index
      %c0_19 = arith.constant 0 : index
      %24 = vector.load %arg7[%c0_18, %c0_19] : memref<128x128xf32, #tpu.memory_space<vmem>>, vector<128x128xf32>
      tpu.vector_store %arg7[%c0_18, %c0_19], %23 {strides = array<i32>} : memref<128x128xf32, #tpu.memory_space<vmem>>, vector<128x128xf32>,
    } else {
    }
    return
  }
  func.func @transform_0(%arg0: i32, %arg1: i32) -> (i32, i32) {
    %c0_i32 = arith.constant 0 : i32
    %c0_i32_0 = arith.constant 0 : i32
    return %arg0, %c0_i32 : i32, i32
  }
  func.func @transform_1(%arg0: i32, %arg1: i32) -> (i32, i32) {
    %c0_i32 = arith.constant 0 : i32
    %c0_i32_0 = arith.constant 0 : i32
    return %c0_i32, %arg1 : i32, i32
  }
  func.func @transform_2(%arg0: i32, %arg1: i32) -> (i32, i32) {
    %c0_i32 = arith.constant 0 : i32
    %c0_i32_0 = arith.constant 0 : i32
    return %c0_i32, %arg1 : i32, i32
  }
  func.func @transform_3(%arg0: i32, %arg1: i32) -> (i32, i32) {
    %c0_i32 = arith.constant 0 : i32
    %c0_i32_0 = arith.constant 0 : i32
    return %arg1, %c0_i32 : i32, i32
  }
  func.func @transform_4(%arg0: i32, %arg1: i32) -> (i32, i32) {
    %c0_i32 = arith.constant 0 : i32
    %c0_i32_0 = arith.constant 0 : i32
    %c0_i32_1 = arith.constant 0 : i32
    return %c0_i32, %c0_i32_0 : i32, i32
  }
  func.func @transform_5(%arg0: i32, %arg1: i32) -> (i32, i32) {
    %c0_i32 = arith.constant 0 : i32
    %c0_i32_0 = arith.constant 0 : i32
    return %arg0, %c0_i32 : i32, i32
  }
}

</mosaic_0001>

<llo_original>
// kernel: tpu_custom_call.1
$region0: #{tpu_custom_call.1}
  #allocation0 [shape = 'u32[]', space=smem, size = 0x4, offset = 0x4, fixed_abs, tag = 'smem constant byte address 0x4 - core index']
  #allocation1 [shape = 'u32[144,128]{1,0:T(1,128)}', space=vmem, size = 0x12000, scoped, tag = 'internal scratch']
  #allocation2 [shape = 'f32[128,128]{1,0:T(8,128)}', space=vmem, size = 0x10000, scoped, tag = 'scratch operand']
  %s0 = inlined_call_operand.hbm [shape: bf16[128,128], index: 0, kind: input, shape index: {}]
  %s1 = inlined_call_operand.hbm [shape: bf16[128,128], index: 1, kind: input, shape index: {}]
  %s2 = inlined_call_operand.vmem [shape: f32[1,128], index: 2, kind: input, shape index: {}]
  %s3 = inlined_call_operand.hbm [shape: bf16[128,128], index: 3, kind: input, shape index: {}]
  %s4 = inlined_call_operand.vmem [shape: f32[1,128], index: 4, kind: input, shape index: {}]
  %s5 = inlined_call_operand.hbm [shape: f32[128,128], index: 5, kind: output, shape index: {}]
  %s6 = sld [smem:[#allocation0]]
  $region54: #{tpu_custom_call.1} parent=0
    _
  %s8 = ssub.s32 1, %s6
  %s9 = scalar_select 0, %s8, %s6
  $region1: #{tpu_custom_call.1} parent=0
    #allocation3 [shape = 'u8[32768]{0}', space=vmem, size = 0x8000, scoped, tag = 'input window, operand 0, single buffered']
    #allocation4 [shape = 's32[1]{0}', space=sflag, size = 0x4, scoped, tag = 'scoped memory for tpu_custom_call.1']
    #allocation5 [shape = 's32[1]{0}', space=sflag, size = 0x4, scoped, tag = 'scoped memory for tpu_custom_call.1']
    #allocation6 [shape = 'u8[32768]{0}', space=vmem, size = 0x8000, scoped, tag = 'input window, operand 1, single buffered']
    #allocation7 [shape = 's32[1]{0}', space=sflag, size = 0x4, scoped, tag = 'scoped memory for tpu_custom_call.1']
    #allocation8 [shape = 'u8[32768]{0}', space=vmem, size = 0x8000, scoped, tag = 'input window, operand 3, single buffered']
    #allocation9 [shape = 'u8[65536]{0}', space=vmem, size = 0x10000, scoped, tag = 'output window, operand 0, single buffered']
    %10 = vsyncpa [#allocation4], 0
    %11 = vsyncpa [#allocation7], 0
    %12 = vsyncpa [#allocation5], 0
    // Predicated region
    $region2: #{tpu_custom_call.1} parent=1 // pred_check
      _
    $region3: #{tpu_custom_call.1} parent=1 // pred_check_branch
      %14 = sbr.rel (0) target = $region5
    $region4: #{tpu_custom_call.1} parent=1 // pred_region
      %s16 = ssub.s32 1024, 1024
      %17 = vsyncadd [#allocation4], %s16
      %s18 = sshll.u32 [#allocation3], 4
      %s19 = int_to_ptr.vmem [resolvable:$true] %s18
      %24 = dma.hbm_to_vmem [thread:$0]  %s0, 1024, %s19, [#allocation4], 64, 64, 4
    $region5: #{tpu_custom_call.1} parent=1 // pred_fallthru
      _
    // Predicated region
    $region6: #{tpu_custom_call.1} parent=1 // pred_check
      _
    $region7: #{tpu_custom_call.1} parent=1 // pred_check_branch
      %26 = sbr.rel (0) target = $region9
    $region8: #{tpu_custom_call.1} parent=1 // pred_region
      %s28 = ssub.s32 1024, 1024
      %29 = vsyncadd [#allocation7], %s28
      %s30 = sshll.u32 [#allocation6], 4
      %s31 = int_to_ptr.vmem [resolvable:$true] %s30
      %36 = dma.hbm_to_vmem [thread:$0]  %s1, 1024, %s31, [#allocation7], 64, 64, 4
    $region9: #{tpu_custom_call.1} parent=1 // pred_fallthru
      _
    // Predicated region
    $region10: #{tpu_custom_call.1} parent=1 // pred_check
      _
    $region11: #{tpu_custom_call.1} parent=1 // pred_check_branch
      %38 = sbr.rel (0) target = $region13
    $region12: #{tpu_custom_call.1} parent=1 // pred_region
      _
    $region13: #{tpu_custom_call.1} parent=1 // pred_fallthru
      _
    // Predicated region
    $region14: #{tpu_custom_call.1} parent=1 // pred_check
      _
    $region15: #{tpu_custom_call.1} parent=1 // pred_check_branch
      %40 = sbr.rel (0) target = $region17
    $region16: #{tpu_custom_call.1} parent=1 // pred_region
      %s42 = ssub.s32 1024, 1024
      %43 = vsyncadd [#allocation7], %s42
      %s44 = sshll.u32 [#allocation8], 4
      %s45 = int_to_ptr.vmem [resolvable:$true] %s44
      %50 = dma.hbm_to_vmem [thread:$0]  %s3, 1024, %s45, [#allocation7], 64, 64, 4
    $region17: #{tpu_custom_call.1} parent=1 // pred_fallthru
      _
    // Predicated region
    $region18: #{tpu_custom_call.1} parent=1 // pred_check
      _
    $region19: #{tpu_custom_call.1} parent=1 // pred_check_branch
      %52 = sbr.rel (0) target = $region21
    $region20: #{tpu_custom_call.1} parent=1 // pred_region
      _
    $region21: #{tpu_custom_call.1} parent=1 // pred_fallthru
      _
    // Predicated region
    $region22: #{tpu_custom_call.1} parent=1 // pred_check
      _
    $region23: #{tpu_custom_call.1} parent=1 // pred_check_branch
      %54 = sbr.rel (0) target = $region25
    $region24: #{tpu_custom_call.1} parent=1 // pred_region
      %55 = dma.done [#allocation4], 1024
    $region25: #{tpu_custom_call.1} parent=1 // pred_fallthru
      _
    // Predicated region
    $region26: #{tpu_custom_call.1} parent=1 // pred_check
      _
    $region27: #{tpu_custom_call.1} parent=1 // pred_check_branch
      %57 = sbr.rel (0) target = $region29
    $region28: #{tpu_custom_call.1} parent=1 // pred_region
      %58 = dma.done [#allocation7], 1024
    $region29: #{tpu_custom_call.1} parent=1 // pred_fallthru
      _
    // Predicated region
    $region30: #{tpu_custom_call.1} parent=1 // pred_check
      _
    $region31: #{tpu_custom_call.1} parent=1 // pred_check_branch
      %60 = sbr.rel (0) target = $region33
    $region32: #{tpu_custom_call.1} parent=1 // pred_region
      %61 = dma.done [#allocation7], 1024
    $region33: #{tpu_custom_call.1} parent=1 // pred_fallthru
      _
    %v63 = vld [vmem:[#allocation3] sm:$0xf]
    %v64 = vld [vmem:[#allocation3 + $0x4] sm:$0xf]
    %v65 = vld [vmem:[#allocation3 + $0x8] sm:$0xf]
    %v66 = vld [vmem:[#allocation3 + $0xc] sm:$0xf]
    %v67 = vld [vmem:[#allocation3 + $0x10] sm:$0xf]
    %v68 = vld [vmem:[#allocation3 + $0x14] sm:$0xf]
    %v69 = vld [vmem:[#allocation3 + $0x18] sm:$0xf]
    %v70 = vld [vmem:[#allocation3 + $0x1c] sm:$0xf]
    %v71 = vld [vmem:[#allocation3 + $0x20] sm:$0xf]
    %v72 = vld [vmem:[#allocation3 + $0x24] sm:$0xf]
    %v73 = vld [vmem:[#allocation3 + $0x28] sm:$0xf]
    %v74 = vld [vmem:[#allocation3 + $0x2c] sm:$0xf]
    %v75 = vld [vmem:[#allocation3 + $0x30] sm:$0xf]
    %v76 = vld [vmem:[#allocation3 + $0x34] sm:$0xf]
    %v77 = vld [vmem:[#allocation3 + $0x38] sm:$0xf]
    %v78 = vld [vmem:[#allocation3 + $0x3c] sm:$0xf]
    %v79 = vld [vmem:[#allocation6] sm:$0xf]
    %v80 = vld [vmem:[#allocation6 + $0x4] sm:$0xf]
    %v81 = vld [vmem:[#allocation6 + $0x8] sm:$0xf]
    %v82 = vld [vmem:[#allocation6 + $0xc] sm:$0xf]
    %v83 = vld [vmem:[#allocation6 + $0x10] sm:$0xf]
    %v84 = vld [vmem:[#allocation6 + $0x14] sm:$0xf]
    %v85 = vld [vmem:[#allocation6 + $0x18] sm:$0xf]
    %v86 = vld [vmem:[#allocation6 + $0x1c] sm:$0xf]
    %v87 = vld [vmem:[#allocation6 + $0x20] sm:$0xf]
    %v88 = vld [vmem:[#allocation6 + $0x24] sm:$0xf]
    %v89 = vld [vmem:[#allocation6 + $0x28] sm:$0xf]
    %v90 = vld [vmem:[#allocation6 + $0x2c] sm:$0xf]
    %v91 = vld [vmem:[#allocation6 + $0x30] sm:$0xf]
    %v92 = vld [vmem:[#allocation6 + $0x34] sm:$0xf]
    %v93 = vld [vmem:[#allocation6 + $0x38] sm:$0xf]
    %v94 = vld [vmem:[#allocation6 + $0x3c] sm:$0xf]
    %v95 = vld [vmem:[%s2] sm:$0x1]
    %v97 = vlaneseq
    %v98 = vshrl.u32 %v97, 7
    %v99 = vsub.s32 0, %v98
    %v100 = vrot.slane %v95, %v99
    %v118 = vunpack.c.l.b16 %v63
    %v119 = vunpack.c.l.b16 %v64
    %v120 = vunpack.c.l.b16 %v65
    %v121 = vunpack.c.l.b16 %v66
    %v122 = vunpack.c.l.b16 %v67
    %v123 = vunpack.c.l.b16 %v68
    %v124 = vunpack.c.l.b16 %v69
    %v125 = vunpack.c.l.b16 %v70
    %v126 = vunpack.c.l.b16 %v71
    %v127 = vunpack.c.l.b16 %v72
    %v128 = vunpack.c.l.b16 %v73
    %v129 = vunpack.c.l.b16 %v74
    %v130 = vunpack.c.l.b16 %v75
    %v131 = vunpack.c.l.b16 %v76
    %v132 = vunpack.c.l.b16 %v77
    %v133 = vunpack.c.l.b16 %v78
    %v134 = vpack.c.b16 %v119, %v118
    %v135 = vpack.c.b16 %v121, %v120
    %v136 = vpack.c.b16 %v123, %v122
    %v137 = vpack.c.b16 %v125, %v124
    %v138 = vpack.c.b16 %v127, %v126
    %v139 = vpack.c.b16 %v129, %v128
    %v140 = vpack.c.b16 %v131, %v130
    %v141 = vpack.c.b16 %v133, %v132
    %v166 = vunpack.c.l.b16 %v79
    %v167 = vunpack.c.l.b16 %v80
    %v168 = vunpack.c.l.b16 %v81
    %v169 = vunpack.c.l.b16 %v82
    %v170 = vunpack.c.l.b16 %v83
    %v171 = vunpack.c.l.b16 %v84
    %v172 = vunpack.c.l.b16 %v85
    %v173 = vunpack.c.l.b16 %v86
    %v174 = vunpack.c.l.b16 %v87
    %v175 = vunpack.c.l.b16 %v88
    %v176 = vunpack.c.l.b16 %v89
    %v177 = vunpack.c.l.b16 %v90
    %v178 = vunpack.c.l.b16 %v91
    %v179 = vunpack.c.l.b16 %v92
    %v180 = vunpack.c.l.b16 %v93
    %v181 = vunpack.c.l.b16 %v94
    %v182 = vpack.c.b16 %v167, %v166
    %v183 = vpack.c.b16 %v169, %v168
    %v184 = vpack.c.b16 %v171, %v170
    %v185 = vpack.c.b16 %v173, %v172
    %v186 = vpack.c.b16 %v175, %v174
    %v187 = vpack.c.b16 %v177, %v176
    %v188 = vpack.c.b16 %v179, %v178
    %v189 = vpack.c.b16 %v181, %v180
    %198 = vmatprep.subr.bf16.mxu0 0
    %199 = vmatpush1.bf16.msra.mxu0 %v182
    %200 = vmatprep.subr.bf16.mxu0 0
    %201 = vmatpush1.bf16.msra.mxu0 %v183
    %202 = vmatprep.subr.bf16.mxu0 0
    %203 = vmatpush1.bf16.msra.mxu0 %v184
    %204 = vmatprep.subr.bf16.mxu0 0
    %205 = vmatpush1.bf16.msra.mxu0 %v185
    %206 = vmatprep.subr.bf16.mxu0 0
    %207 = vmatpush1.bf16.msra.mxu0 %v186
    %208 = vmatprep.subr.bf16.mxu0 0
    %209 = vmatpush1.bf16.msra.mxu0 %v187
    %210 = vmatprep.subr.bf16.mxu0 0
    %211 = vmatpush1.bf16.msra.mxu0 %v188
    %212 = vmatprep.subr.bf16.mxu0 0
    %213 = vmatpush1.bf16.msra.mxu0 %v189
    %214 = vmatprep.subr.bf16.mxu0 0
    %215 = vmatpush1.bf16.msra.mxu0 0
    %216 = vmatprep.subr.bf16.mxu0 0
    %217 = vmatpush1.bf16.msra.mxu0 0
    %218 = vmatprep.subr.bf16.mxu0 0
    %219 = vmatpush1.bf16.msra.mxu0 0
    %220 = vmatprep.subr.bf16.mxu0 0
    %221 = vmatpush1.bf16.msra.mxu0 0
    %222 = vmatprep.subr.bf16.mxu0 0
    %223 = vmatpush1.bf16.msra.mxu0 0
    %224 = vmatprep.subr.bf16.mxu0 0
    %225 = vmatpush1.bf16.msra.mxu0 0
    %226 = vmatprep.subr.bf16.mxu0 0
    %227 = vmatpush1.bf16.msra.mxu0 0
    %228 = vmatprep.subr.bf16.mxu0 0
    %229 = vmatpush1.bf16.msra.mxu0 0
    %230 = vmatprep.mubr.bf16.mxu0 0
    %231 = vmatmul.mubr.bf16.gmra.mrb[0].mxu0 %v134
    %v232 = vpop.f32.mrb[0].mxu0
    %v233 = vadd.f32 %v100, %v232
    %v234 = vpop.f32.mrb[0].mxu0
    %v235 = vpop.f32.mrb[0].mxu0
    %v236 = vadd.f32 %v100, %v235
    %v237 = vpop.f32.mrb[0].mxu0
    %238 = vmatprep.mubr.bf16.mxu0 0
    %239 = vmatmul.mubr.bf16.gmra.mrb[0].mxu0 %v135
    %v240 = vpop.f32.mrb[0].mxu0
    %v241 = vadd.f32 %v100, %v240
    %v242 = vpop.f32.mrb[0].mxu0
    %v243 = vpop.f32.mrb[0].mxu0
    %v244 = vadd.f32 %v100, %v243
    %v245 = vpop.f32.mrb[0].mxu0
    %246 = vmatprep.mubr.bf16.mxu0 0
    %247 = vmatmul.mubr.bf16.gmra.mrb[0].mxu0 %v136
    %v248 = vpop.f32.mrb[0].mxu0
    %v249 = vadd.f32 %v100, %v248
    %v250 = vpop.f32.mrb[0].mxu0
    %v251 = vpop.f32.mrb[0].mxu0
    %v252 = vadd.f32 %v100, %v251
    %v253 = vpop.f32.mrb[0].mxu0
    %254 = vmatprep.mubr.bf16.mxu0 0
    %255 = vmatmul.mubr.bf16.gmra.mrb[0].mxu0 %v137
    %v256 = vpop.f32.mrb[0].mxu0
    %v257 = vadd.f32 %v100, %v256
    %v258 = vpop.f32.mrb[0].mxu0
    %v259 = vpop.f32.mrb[0].mxu0
    %v260 = vadd.f32 %v100, %v259
    %v261 = vpop.f32.mrb[0].mxu0
    %262 = vmatprep.mubr.bf16.mxu0 0
    %263 = vmatmul.mubr.bf16.gmra.mrb[0].mxu0 %v138
    %v264 = vpop.f32.mrb[0].mxu0
    %v265 = vadd.f32 %v100, %v264
    %v266 = vpop.f32.mrb[0].mxu0
    %v267 = vpop.f32.mrb[0].mxu0
    %v268 = vadd.f32 %v100, %v267
    %v269 = vpop.f32.mrb[0].mxu0
    %270 = vmatprep.mubr.bf16.mxu0 0
    %271 = vmatmul.mubr.bf16.gmra.mrb[0].mxu0 %v139
    %v272 = vpop.f32.mrb[0].mxu0
    %v273 = vadd.f32 %v100, %v272
    %v274 = vpop.f32.mrb[0].mxu0
    %v275 = vpop.f32.mrb[0].mxu0
    %v276 = vadd.f32 %v100, %v275
    %v277 = vpop.f32.mrb[0].mxu0
    %278 = vmatprep.mubr.bf16.mxu0 0
    %279 = vmatmul.mubr.bf16.gmra.mrb[0].mxu0 %v140
    %v280 = vpop.f32.mrb[0].mxu0
    %v281 = vadd.f32 %v100, %v280
    %v282 = vpop.f32.mrb[0].mxu0
    %v283 = vpop.f32.mrb[0].mxu0
    %v284 = vadd.f32 %v100, %v283
    %v285 = vpop.f32.mrb[0].mxu0
    %286 = vmatprep.mubr.bf16.mxu0 0
    %287 = vmatmul.mubr.bf16.gmra.mrb[0].mxu0 %v141
    %v288 = vpop.f32.mrb[0].mxu0
    %v289 = vadd.f32 %v100, %v288
    %v290 = vpop.f32.mrb[0].mxu0
    %v291 = vpop.f32.mrb[0].mxu0
    %v292 = vadd.f32 %v100, %v291
    %v293 = vpop.f32.mrb[0].mxu0
    %294 = vdwg.mxu0
    %v295 = vmax.f32 %v233, 0.0
    %v296 = vmax.f32 %v236, 0.0
    %v297 = vmax.f32 %v241, 0.0
    %v298 = vmax.f32 %v244, 0.0
    %v299 = vmax.f32 %v249, 0.0
    %v300 = vmax.f32 %v252, 0.0
    %v301 = vmax.f32 %v257, 0.0
    %v302 = vmax.f32 %v260, 0.0
    %v303 = vmax.f32 %v265, 0.0
    %v304 = vmax.f32 %v268, 0.0
    %v305 = vmax.f32 %v273, 0.0
    %v306 = vmax.f32 %v276, 0.0
    %v307 = vmax.f32 %v281, 0.0
    %v308 = vmax.f32 %v284, 0.0
    %v309 = vmax.f32 %v289, 0.0
    %v310 = vmax.f32 %v292, 0.0
    %v311 = vpack.c.bf16 %v296, %v295
    %v312 = vpack.c.bf16 %v298, %v297
    %v313 = vpack.c.bf16 %v300, %v299
    %v314 = vpack.c.bf16 %v302, %v301
    %v315 = vpack.c.bf16 %v304, %v303
    %v316 = vpack.c.bf16 %v306, %v305
    %v317 = vpack.c.bf16 %v308, %v307
    %v318 = vpack.c.bf16 %v310, %v309
    %v319 = vld [vmem:[#allocation8] sm:$0xf]
    %v320 = vld [vmem:[#allocation8 + $0x4] sm:$0xf]
    %v321 = vld [vmem:[#allocation8 + $0x8] sm:$0xf]
    %v322 = vld [vmem:[#allocation8 + $0xc] sm:$0xf]
    %v323 = vld [vmem:[#allocation8 + $0x10] sm:$0xf]
    %v324 = vld [vmem:[#allocation8 + $0x14] sm:$0xf]
    %v325 = vld [vmem:[#allocation8 + $0x18] sm:$0xf]
    %v326 = vld [vmem:[#allocation8 + $0x1c] sm:$0xf]
    %v327 = vld [vmem:[#allocation8 + $0x20] sm:$0xf]
    %v328 = vld [vmem:[#allocation8 + $0x24] sm:$0xf]
    %v329 = vld [vmem:[#allocation8 + $0x28] sm:$0xf]
    %v330 = vld [vmem:[#allocation8 + $0x2c] sm:$0xf]
    %v331 = vld [vmem:[#allocation8 + $0x30] sm:$0xf]
    %v332 = vld [vmem:[#allocation8 + $0x34] sm:$0xf]
    %v333 = vld [vmem:[#allocation8 + $0x38] sm:$0xf]
    %v334 = vld [vmem:[#allocation8 + $0x3c] sm:$0xf]
    %v351 = vunpack.c.l.b16 %v319
    %v352 = vunpack.c.l.b16 %v320
    %v353 = vunpack.c.l.b16 %v321
    %v354 = vunpack.c.l.b16 %v322
    %v355 = vunpack.c.l.b16 %v323
    %v356 = vunpack.c.l.b16 %v324
    %v357 = vunpack.c.l.b16 %v325
    %v358 = vunpack.c.l.b16 %v326
    %v359 = vunpack.c.l.b16 %v327
    %v360 = vunpack.c.l.b16 %v328
    %v361 = vunpack.c.l.b16 %v329
    %v362 = vunpack.c.l.b16 %v330
    %v363 = vunpack.c.l.b16 %v331
    %v364 = vunpack.c.l.b16 %v332
    %v365 = vunpack.c.l.b16 %v333
    %v366 = vunpack.c.l.b16 %v334
    %v367 = vpack.c.b16 %v352, %v351
    %v368 = vpack.c.b16 %v354, %v353
    %v369 = vpack.c.b16 %v356, %v355
    %v370 = vpack.c.b16 %v358, %v357
    %v371 = vpack.c.b16 %v360, %v359
    %v372 = vpack.c.b16 %v362, %v361
    %v373 = vpack.c.b16 %v364, %v363
    %v374 = vpack.c.b16 %v366, %v365
    %383 = vmatprep.subr.bf16.mxu0 0
    %384 = vmatpush1.bf16.msra.mxu0 %v367
    %385 = vmatprep.subr.bf16.mxu0 0
    %386 = vmatpush1.bf16.msra.mxu0 %v368
    %387 = vmatprep.subr.bf16.mxu0 0
    %388 = vmatpush1.bf16.msra.mxu0 %v369
    %389 = vmatprep.subr.bf16.mxu0 0
    %390 = vmatpush1.bf16.msra.mxu0 %v370
    %391 = vmatprep.subr.bf16.mxu0 0
    %392 = vmatpush1.bf16.msra.mxu0 %v371
    %393 = vmatprep.subr.bf16.mxu0 0
    %394 = vmatpush1.bf16.msra.mxu0 %v372
    %395 = vmatprep.subr.bf16.mxu0 0
    %396 = vmatpush1.bf16.msra.mxu0 %v373
    %397 = vmatprep.subr.bf16.mxu0 0
    %398 = vmatpush1.bf16.msra.mxu0 %v374
    %399 = vmatprep.subr.bf16.mxu0 0
    %400 = vmatpush1.bf16.msra.mxu0 0
    %401 = vmatprep.subr.bf16.mxu0 0
    %402 = vmatpush1.bf16.msra.mxu0 0
    %403 = vmatprep.subr.bf16.mxu0 0
    %404 = vmatpush1.bf16.msra.mxu0 0
    %405 = vmatprep.subr.bf16.mxu0 0
    %406 = vmatpush1.bf16.msra.mxu0 0
    %407 = vmatprep.subr.bf16.mxu0 0
    %408 = vmatpush1.bf16.msra.mxu0 0
    %409 = vmatprep.subr.bf16.mxu0 0
    %410 = vmatpush1.bf16.msra.mxu0 0
    %411 = vmatprep.subr.bf16.mxu0 0
    %412 = vmatpush1.bf16.msra.mxu0 0
    %413 = vmatprep.subr.bf16.mxu0 0
    %414 = vmatpush1.bf16.msra.mxu0 0
    %415 = vmatprep.mubr.bf16.mxu0 0
    %416 = vmatmul.mubr.bf16.gmra.mrb[0].mxu0 %v311
    %v417 = vpop.f32.mrb[0].mxu0
    %v418 = vadd.f32 0.0, %v417
    %v419 = vpop.f32.mrb[0].mxu0
    %v420 = vpop.f32.mrb[0].mxu0
    %v421 = vadd.f32 0.0, %v420
    %v422 = vpop.f32.mrb[0].mxu0
    %423 = vmatprep.mubr.bf16.mxu0 0
    %424 = vmatmul.mubr.bf16.gmra.mrb[0].mxu0 %v312
    %v425 = vpop.f32.mrb[0].mxu0
    %v426 = vadd.f32 0.0, %v425
    %v427 = vpop.f32.mrb[0].mxu0
    %v428 = vpop.f32.mrb[0].mxu0
    %v429 = vadd.f32 0.0, %v428
    %v430 = vpop.f32.mrb[0].mxu0
    %431 = vmatprep.mubr.bf16.mxu0 0
    %432 = vmatmul.mubr.bf16.gmra.mrb[0].mxu0 %v313
    %v433 = vpop.f32.mrb[0].mxu0
    %v434 = vadd.f32 0.0, %v433
    %v435 = vpop.f32.mrb[0].mxu0
    %v436 = vpop.f32.mrb[0].mxu0
    %v437 = vadd.f32 0.0, %v436
    %v438 = vpop.f32.mrb[0].mxu0
    %439 = vmatprep.mubr.bf16.mxu0 0
    %440 = vmatmul.mubr.bf16.gmra.mrb[0].mxu0 %v314
    %v441 = vpop.f32.mrb[0].mxu0
    %v442 = vadd.f32 0.0, %v441
    %v443 = vpop.f32.mrb[0].mxu0
    %v444 = vpop.f32.mrb[0].mxu0
    %v445 = vadd.f32 0.0, %v444
    %v446 = vpop.f32.mrb[0].mxu0
    %447 = vmatprep.mubr.bf16.mxu0 0
    %448 = vmatmul.mubr.bf16.gmra.mrb[0].mxu0 %v315
    %v449 = vpop.f32.mrb[0].mxu0
    %v450 = vadd.f32 0.0, %v449
    %v451 = vpop.f32.mrb[0].mxu0
    %v452 = vpop.f32.mrb[0].mxu0
    %v453 = vadd.f32 0.0, %v452
    %v454 = vpop.f32.mrb[0].mxu0
    %455 = vmatprep.mubr.bf16.mxu0 0
    %456 = vmatmul.mubr.bf16.gmra.mrb[0].mxu0 %v316
    %v457 = vpop.f32.mrb[0].mxu0
    %v458 = vadd.f32 0.0, %v457
    %v459 = vpop.f32.mrb[0].mxu0
    %v460 = vpop.f32.mrb[0].mxu0
    %v461 = vadd.f32 0.0, %v460
    %v462 = vpop.f32.mrb[0].mxu0
    %463 = vmatprep.mubr.bf16.mxu0 0
    %464 = vmatmul.mubr.bf16.gmra.mrb[0].mxu0 %v317
    %v465 = vpop.f32.mrb[0].mxu0
    %v466 = vadd.f32 0.0, %v465
    %v467 = vpop.f32.mrb[0].mxu0
    %v468 = vpop.f32.mrb[0].mxu0
    %v469 = vadd.f32 0.0, %v468
    %v470 = vpop.f32.mrb[0].mxu0
    %471 = vmatprep.mubr.bf16.mxu0 0
    %472 = vmatmul.mubr.bf16.gmra.mrb[0].mxu0 %v318
    %v473 = vpop.f32.mrb[0].mxu0
    %v474 = vadd.f32 0.0, %v473
    %v475 = vpop.f32.mrb[0].mxu0
    %v476 = vpop.f32.mrb[0].mxu0
    %v477 = vadd.f32 0.0, %v476
    %v478 = vpop.f32.mrb[0].mxu0
    %479 = vdwg.mxu0
    %p480 = scmp.eq.s32.totalorder 0, 0
    // Predicated region
    $region34: #{tpu_custom_call.1} parent=1 // pred_check
      %p481 = pneg %p480
    $region35: #{tpu_custom_call.1} parent=1 // pred_check_branch
      %483 = sbr.rel (%p481) target = $region37
    $region36: #{tpu_custom_call.1} parent=1 // pred_region
      %484 = vst [vmem:[#allocation2] sm:$0xff] %v418
      %485 = vst [vmem:[#allocation2 + $0x8] sm:$0xff] %v421
      %486 = vst [vmem:[#allocation2 + $0x10] sm:$0xff] %v426
      %487 = vst [vmem:[#allocation2 + $0x18] sm:$0xff] %v429
      %488 = vst [vmem:[#allocation2 + $0x20] sm:$0xff] %v434
      %489 = vst [vmem:[#allocation2 + $0x28] sm:$0xff] %v437
      %490 = vst [vmem:[#allocation2 + $0x30] sm:$0xff] %v442
      %491 = vst [vmem:[#allocation2 + $0x38] sm:$0xff] %v445
      %492 = vst [vmem:[#allocation2 + $0x40] sm:$0xff] %v450
      %493 = vst [vmem:[#allocation2 + $0x48] sm:$0xff] %v453
      %494 = vst [vmem:[#allocation2 + $0x50] sm:$0xff] %v458
      %495 = vst [vmem:[#allocation2 + $0x58] sm:$0xff] %v461
      %496 = vst [vmem:[#allocation2 + $0x60] sm:$0xff] %v466
      %497 = vst [vmem:[#allocation2 + $0x68] sm:$0xff] %v469
      %498 = vst [vmem:[#allocation2 + $0x70] sm:$0xff] %v474
      %499 = vst [vmem:[#allocation2 + $0x78] sm:$0xff] %v477
    $region37: #{tpu_custom_call.1} parent=1 // pred_fallthru
      _
    %p500 = scmp.ne.s32.totalorder 0, 0
    // Predicated region
    $region38: #{tpu_custom_call.1} parent=1 // pred_check
      %p501 = pneg %p500
    $region39: #{tpu_custom_call.1} parent=1 // pred_check_branch
      %503 = sbr.rel (%p501) target = $region41
    $region40: #{tpu_custom_call.1} parent=1 // pred_region
      %v504 = vld [vmem:[#allocation2] sm:$0xff]
      %v505 = vld [vmem:[#allocation2 + $0x8] sm:$0xff]
      %v506 = vld [vmem:[#allocation2 + $0x10] sm:$0xff]
      %v507 = vld [vmem:[#allocation2 + $0x18] sm:$0xff]
      %v508 = vld [vmem:[#allocation2 + $0x20] sm:$0xff]
      %v509 = vld [vmem:[#allocation2 + $0x28] sm:$0xff]
      %v510 = vld [vmem:[#allocation2 + $0x30] sm:$0xff]
      %v511 = vld [vmem:[#allocation2 + $0x38] sm:$0xff]
      %v512 = vld [vmem:[#allocation2 + $0x40] sm:$0xff]
      %v513 = vld [vmem:[#allocation2 + $0x48] sm:$0xff]
      %v514 = vld [vmem:[#allocation2 + $0x50] sm:$0xff]
      %v515 = vld [vmem:[#allocation2 + $0x58] sm:$0xff]
      %v516 = vld [vmem:[#allocation2 + $0x60] sm:$0xff]
      %v517 = vld [vmem:[#allocation2 + $0x68] sm:$0xff]
      %v518 = vld [vmem:[#allocation2 + $0x70] sm:$0xff]
      %v519 = vld [vmem:[#allocation2 + $0x78] sm:$0xff]
      %v520 = vadd.f32 %v504, %v418
      %v521 = vadd.f32 %v505, %v421
      %v522 = vadd.f32 %v506, %v426
      %v523 = vadd.f32 %v507, %v429
      %v524 = vadd.f32 %v508, %v434
      %v525 = vadd.f32 %v509, %v437
      %v526 = vadd.f32 %v510, %v442
      %v527 = vadd.f32 %v511, %v445
      %v528 = vadd.f32 %v512, %v450
      %v529 = vadd.f32 %v513, %v453
      %v530 = vadd.f32 %v514, %v458
      %v531 = vadd.f32 %v515, %v461
      %v532 = vadd.f32 %v516, %v466
      %v533 = vadd.f32 %v517, %v469
      %v534 = vadd.f32 %v518, %v474
      %v535 = vadd.f32 %v519, %v477
      %536 = vst [vmem:[#allocation2] sm:$0xff] %v520
      %537 = vst [vmem:[#allocation2 + $0x8] sm:$0xff] %v521
      %538 = vst [vmem:[#allocation2 + $0x10] sm:$0xff] %v522
      %539 = vst [vmem:[#allocation2 + $0x18] sm:$0xff] %v523
      %540 = vst [vmem:[#allocation2 + $0x20] sm:$0xff] %v524
      %541 = vst [vmem:[#allocation2 + $0x28] sm:$0xff] %v525
      %542 = vst [vmem:[#allocation2 + $0x30] sm:$0xff] %v526
      %543 = vst [vmem:[#allocation2 + $0x38] sm:$0xff] %v527
      %544 = vst [vmem:[#allocation2 + $0x40] sm:$0xff] %v528
      %545 = vst [vmem:[#allocation2 + $0x48] sm:$0xff] %v529
      %546 = vst [vmem:[#allocation2 + $0x50] sm:$0xff] %v530
      %547 = vst [vmem:[#allocation2 + $0x58] sm:$0xff] %v531
      %548 = vst [vmem:[#allocation2 + $0x60] sm:$0xff] %v532
      %549 = vst [vmem:[#allocation2 + $0x68] sm:$0xff] %v533
      %550 = vst [vmem:[#allocation2 + $0x70] sm:$0xff] %v534
      %551 = vst [vmem:[#allocation2 + $0x78] sm:$0xff] %v535
    $region41: #{tpu_custom_call.1} parent=1 // pred_fallthru
      _
    // Predicated region
    $region42: #{tpu_custom_call.1} parent=1 // pred_check
      %p552 = pneg %p480
    $region43: #{tpu_custom_call.1} parent=1 // pred_check_branch
      %554 = sbr.rel (%p552) target = $region45
    $region44: #{tpu_custom_call.1} parent=1 // pred_region
      %v555 = vld [vmem:[#allocation2] sm:$0xff]
      %v556 = vld [vmem:[#allocation2 + $0x8] sm:$0xff]
      %v557 = vld [vmem:[#allocation2 + $0x10] sm:$0xff]
      %v558 = vld [vmem:[#allocation2 + $0x18] sm:$0xff]
      %v559 = vld [vmem:[#allocation2 + $0x20] sm:$0xff]
      %v560 = vld [vmem:[#allocation2 + $0x28] sm:$0xff]
      %v561 = vld [vmem:[#allocation2 + $0x30] sm:$0xff]
      %v562 = vld [vmem:[#allocation2 + $0x38] sm:$0xff]
      %v563 = vld [vmem:[#allocation2 + $0x40] sm:$0xff]
      %v564 = vld [vmem:[#allocation2 + $0x48] sm:$0xff]
      %v565 = vld [vmem:[#allocation2 + $0x50] sm:$0xff]
      %v566 = vld [vmem:[#allocation2 + $0x58] sm:$0xff]
      %v567 = vld [vmem:[#allocation2 + $0x60] sm:$0xff]
      %v568 = vld [vmem:[#allocation2 + $0x68] sm:$0xff]
      %v569 = vld [vmem:[#allocation2 + $0x70] sm:$0xff]
      %v570 = vld [vmem:[#allocation2 + $0x78] sm:$0xff]
      %v571 = vld [vmem:[%s4] sm:$0x1]
      %v573 = vlaneseq
      %v574 = vshrl.u32 %v573, 7
      %v575 = vsub.s32 0, %v574
      %v576 = vrot.slane %v571, %v575
      %v578 = vadd.f32 %v555, %v576
      %v579 = vadd.f32 %v556, %v576
      %v580 = vadd.f32 %v557, %v576
      %v581 = vadd.f32 %v558, %v576
      %v582 = vadd.f32 %v559, %v576
      %v583 = vadd.f32 %v560, %v576
      %v584 = vadd.f32 %v561, %v576
      %v585 = vadd.f32 %v562, %v576
      %v586 = vadd.f32 %v563, %v576
      %v587 = vadd.f32 %v564, %v576
      %v588 = vadd.f32 %v565, %v576
      %v589 = vadd.f32 %v566, %v576
      %v590 = vadd.f32 %v567, %v576
      %v591 = vadd.f32 %v568, %v576
      %v592 = vadd.f32 %v569, %v576
      %v593 = vadd.f32 %v570, %v576
      %594 = vst [vmem:[#allocation9] sm:$0xff] %v578
      %595 = vst [vmem:[#allocation9 + $0x8] sm:$0xff] %v579
      %596 = vst [vmem:[#allocation9 + $0x10] sm:$0xff] %v580
      %597 = vst [vmem:[#allocation9 + $0x18] sm:$0xff] %v581
      %598 = vst [vmem:[#allocation9 + $0x20] sm:$0xff] %v582
      %599 = vst [vmem:[#allocation9 + $0x28] sm:$0xff] %v583
      %600 = vst [vmem:[#allocation9 + $0x30] sm:$0xff] %v584
      %601 = vst [vmem:[#allocation9 + $0x38] sm:$0xff] %v585
      %602 = vst [vmem:[#allocation9 + $0x40] sm:$0xff] %v586
      %603 = vst [vmem:[#allocation9 + $0x48] sm:$0xff] %v587
      %604 = vst [vmem:[#allocation9 + $0x50] sm:$0xff] %v588
      %605 = vst [vmem:[#allocation9 + $0x58] sm:$0xff] %v589
      %606 = vst [vmem:[#allocation9 + $0x60] sm:$0xff] %v590
      %607 = vst [vmem:[#allocation9 + $0x68] sm:$0xff] %v591
      %608 = vst [vmem:[#allocation9 + $0x70] sm:$0xff] %v592
      %609 = vst [vmem:[#allocation9 + $0x78] sm:$0xff] %v593
    $region45: #{tpu_custom_call.1} parent=1 // pred_fallthru
      _
    // Predicated region
    $region46: #{tpu_custom_call.1} parent=1 // pred_check
      _
    $region47: #{tpu_custom_call.1} parent=1 // pred_check_branch
      %611 = sbr.rel (0) target = $region49
    $region48: #{tpu_custom_call.1} parent=1 // pred_region
      %s613 = ssub.s32 2048, 2048
      %614 = vsyncadd [#allocation5], %s613
      %s615 = sshll.u32 [#allocation9], 4
      %s616 = int_to_ptr.vmem [resolvable:$true] %s615
      %621 = dma.vmem_to_hbm [thread:$0]  %s616, 2048, %s5, [#allocation5], 128, 128, 8
    $region49: #{tpu_custom_call.1} parent=1 // pred_fallthru
      _
    // Predicated region
    $region50: #{tpu_custom_call.1} parent=1 // pred_check
      _
    $region51: #{tpu_custom_call.1} parent=1 // pred_check_branch
      %623 = sbr.rel (0) target = $region53
    $region52: #{tpu_custom_call.1} parent=1 // pred_region
      %624 = dma.done [#allocation5], 2048
    $region53: #{tpu_custom_call.1} parent=1 // pred_fallthru
      _
    %625 = vsyncpa [#allocation4], 1
    %626 = vsyncpa [#allocation7], 1
    %627 = vsyncpa [#allocation5], 1

</llo_original>
